<compile_context>
chip_gen: v6e
topology: v6e:2x2x1
jax: 0.10.0
libtpu: 0.0.40
codegen_flags: <defaults>
</compile_context>

<pallas_src>
import functools

import jax
import jax.numpy as jnp
from jax.experimental import pallas as pl
from jax.experimental.pallas import tpu as pltpu

_LANE = 128


def _round_up(x, m):
    return (x + m - 1) // m * m


def _cdiv(a, b):
    return (a + b - 1) // b


def _dice_partial_kernel(pred_ref, tgt_ref, out_ref, inter_acc, union_acc,
                         *, smooth, n_total):
    """Accumulates per-(batch, class) dice statistics over the tiled N axis.

    pred_ref: (B, c_blk, tile_n) input dtype (upcast to f32 in-kernel)
    tgt_ref : (B, tile_n) int32 class labels
    out_ref : (1, B, c_blk) f32 dice scores, written on the last N step
    """
    n_idx = pl.program_id(1)

    @pl.when(n_idx == 0)
    def _init():
        inter_acc[...] = jnp.zeros_like(inter_acc)
        union_acc[...] = jnp.zeros_like(union_acc)

    pred = pred_ref[...].astype(jnp.float32)       # (B, c_blk, tile_n)
    tgt = tgt_ref[...]                             # (B, tile_n) i32
    _, c_blk, tile_n = pred.shape

    # Per-class ids as a (1, c_blk, 1) column; the == compare broadcasts it over
    # batch and lanes, so no (c_blk, tile_n) iota is regenerated every grid step.
    c_off = pl.program_id(0) * c_blk
    class_ids = c_off + jax.lax.broadcasted_iota(jnp.int32, (1, c_blk, 1), 1)
    mask = tgt[:, None, :] == class_ids            # (B, c_blk, tile_n) bool

    if n_total % tile_n:                           # static: ragged last N tile only
        lane = jax.lax.broadcasted_iota(jnp.int32, (1, 1, tile_n), 2)
        valid = lane < (n_total - n_idx * tile_n)  # (1, 1, tile_n) bool
        mask = jnp.logical_and(mask, valid)
        pred = jnp.where(valid, pred, 0.0)

    # No materialized one-hot; fused union reduction -> only 2 XLU reduces per tile.
    onehot = jnp.where(mask, 1.0, 0.0)
    inter_acc[...] += jnp.sum(jnp.where(mask, pred, 0.0), axis=2)   # (B, c_blk)
    union_acc[...] += jnp.sum(pred + onehot, axis=2)                # (B, c_blk)

    @pl.when(n_idx == pl.num_programs(1) - 1)
    def _finalize():
        dice = (2.0 * inter_acc[...] + smooth) / (union_acc[...] + smooth)
        out_ref[...] = dice[None, :, :]


def dice_loss(predictions, targets, weights=None, smooth=1e-5):
    """predictions: (B, C, H, W) float; targets: (B, H, W) int class labels."""
    B, C = predictions.shape[0], predictions.shape[1]
    pred = predictions.reshape(B, C, -1)                 # (B, C, N), native dtype
    tgt = targets.reshape(B, -1).astype(jnp.int32)       # (B, N)
    N = pred.shape[2]
    pred_isz = jnp.dtype(pred.dtype).itemsize
    sub = {4: 8, 2: 16, 1: 32}.get(pred_isz, 8)          # sublane quantum for dtype

    # --- generation-aware VMEM budget (48 MiB on v7x, 96 MiB on v5e/v6e) ---
    try:
        vmem_cap = int(pltpu.get_tpu_info().vmem_capacity_bytes)
    except Exception:
        vmem_cap = 64 * 1024 * 1024                      # conservative fallback
    vmem_limit = min((vmem_cap * 3) // 4, 96 * 1024 * 1024)
    compute_budget = (vmem_limit * 3) // 4               # headroom for out/scratch

    # --- class-block candidates: ~C/2 split first (multi-TC friendly grid axis),
    #     then the full class dim, then smaller sublane-aligned blocks. ---
    halves = []
    k = 2
    while k <= max(C, 2):
        cb = _round_up(_cdiv(C, k), sub)
        if cb >= C:
            break
        if cb not in halves:
            halves.append(cb)
        if cb <= sub:
            break
        k *= 2
    c_cands = ([halves[0]] if halves else []) + [C] + halves[1:]

    # --- lane-dense N tile, biggest first; shrink c_blk before tile_n < 512 ---
    n128 = _round_up(N, _LANE)
    tile_cands = [t for t in (8192, 4096, 2048, 1024, 512, 256, 128) if t <= n128]

    def fits(cb, tn):
        dbuf = 2 * (B * cb * tn * pred_isz + B * tn * 4)   # double-buffered inputs
        temps = 4 * B * cb * tn * 4                        # f32 elementwise temporaries
        return dbuf + temps <= compute_budget

    c_blk, tile_n = c_cands[-1], 128
    found = False
    for tn in tile_cands:
        for cb in c_cands:
            if fits(cb, tn):
                c_blk, tile_n = cb, tn
                found = True
                break
        if found:
            break

    # If one tile covers all of N, use the full (always-legal) dim: no N masking.
    if tile_n >= N:
        tile_n = N

    g_c = _cdiv(C, c_blk)
    g_n = _cdiv(N, tile_n)

    kernel = functools.partial(_dice_partial_kernel, smooth=float(smooth), n_total=N)
    dice_blocks = pl.pallas_call(
        kernel,
        out_shape=jax.ShapeDtypeStruct((g_c, B, c_blk), jnp.float32),
        grid_spec=pltpu.PrefetchScalarGridSpec(
            num_scalar_prefetch=0,
            grid=(g_c, g_n),
            in_specs=[
                pl.BlockSpec((B, c_blk, tile_n), lambda c, n: (0, c, n)),
                pl.BlockSpec((B, tile_n), lambda c, n: (0, n)),
            ],
            out_specs=pl.BlockSpec((1, B, c_blk), lambda c, n: (c, 0, 0)),
            scratch_shapes=[
                pltpu.VMEM((B, c_blk), jnp.float32),   # intersection
                pltpu.VMEM((B, c_blk), jnp.float32),   # union = sum(pred) + count(tgt)
            ],
        ),
        compiler_params=pltpu.CompilerParams(
            dimension_semantics=("parallel", "arbitrary"),
            vmem_limit_bytes=int(vmem_limit),
        ),
        cost_estimate=pl.CostEstimate(
            flops=6 * B * C * N,
            transcendentals=0,
            bytes_accessed=B * C * N * pred_isz + g_c * B * N * 4 + 4 * g_c * B * c_blk,
        ),
    )(pred, tgt)

    # (g_c, B, c_blk) -> (B, g_c*c_blk), drop padded classes; tiny JAX epilogue.
    dice = jnp.swapaxes(dice_blocks, 0, 1).reshape(B, g_c * c_blk)[:, :C]
    if weights is not None:
        dice = dice * jnp.asarray(weights, dice.dtype).reshape(1, C)
    return 1.0 - jnp.mean(dice)


def dice_loss_ref(predictions, targets, weights, smooth=1e-5):
    """Pure-JAX transcription of the PyTorch forward (for verification)."""
    B, C = predictions.shape[0], predictions.shape[1]
    pred = predictions.reshape(B, C, -1)
    t = jax.nn.one_hot(targets, C, dtype=pred.dtype)   # (B, H, W, C)
    t = t.reshape(B, t.shape[-1], -1)                  # .view(B, C, -1)
    t = jnp.transpose(t, (0, 2, 1))                    # .permute(0, 2, 1)
    intersection = jnp.sum(pred * t, axis=2)
    union = jnp.sum(pred, axis=2) + jnp.sum(t, axis=2)
    dice = (2.0 * intersection + smooth) / (union + smooth)
    if weights is not None:
        dice = dice * weights
    return 1.0 - jnp.mean(dice)


if __name__ == "__main__":
    key = jax.random.PRNGKey(0)
    k1, k2, k3, k4 = jax.random.split(key, 4)

    # Case 1: small shapes (C == H*W required for the reference's view/permute).
    # Exercises the class-block split (g_c=2) and a sub-128-lane full-N block.
    B, C, H, W = 2, 16, 4, 4
    preds1 = jax.nn.softmax(jax.random.normal(k1, (B, C, H, W), jnp.float32), axis=1)
    tgts1 = jax.random.randint(k2, (B, H, W), 0, C, jnp.int32)
    w1 = jnp.linspace(0.5, 1.5, C, dtype=jnp.float32)
    loss1 = dice_loss(preds1, tgts1, w1, smooth=1e-5)
    jax.block_until_ready(loss1)
    ref1 = dice_loss_ref(preds1, tgts1, w1, smooth=1e-5)
    assert jnp.allclose(loss1, ref1, atol=1e-5, rtol=1e-5), (loss1, ref1)

    # Case 2: larger N exercises the tiled/pipelined ragged-N reduction (masked last
    # N tile), ragged class blocks (g_c=2, c_blk=152 on C=289), and no weights.
    B2, C2, H2, W2 = 2, 289, 17, 17
    preds2 = jax.nn.softmax(jax.random.normal(k3, (B2, C2, H2, W2), jnp.float32), axis=1)
    tgts2 = jax.random.randint(k4, (B2, H2, W2), 0, C2, jnp.int32)
    loss2 = dice_loss(preds2, tgts2, None, smooth=1e-5)
    jax.block_until_ready(loss2)
    ref2 = dice_loss_ref(preds2, tgts2, None, smooth=1e-5)
    assert jnp.allclose(loss2, ref2, atol=1e-5, rtol=1e-5), (loss2, ref2)

    print("KERNEL_OK")
</pallas_src>

<mosaic_0001>
module attributes {stable_mosaic.version = 11 : i64} {
  func.func @_dice_partial_kernel(%arg0: i32, %arg1: i32, %arg2: memref<2x8x16xf32, #tpu.memory_space<vmem>>, %arg3: memref<2x16xi32, #tpu.memory_space<vmem>>, %arg4: memref<1x2x8xf32, #tpu.memory_space<vmem>>, %arg5: memref<2x8xf32, #tpu.memory_space<vmem>>, %arg6: memref<2x8xf32, #tpu.memory_space<vmem>>) attributes {dimension_semantics = [#tpu.dimension_semantics<parallel>, #tpu.dimension_semantics<arbitrary>], iteration_bounds = array<i64: 2, 1>, scalar_prefetch = 0 : i64, scratch_operands = 2 : i64, tpu.core_type = #tpu.core_type<tc>, window_params = [{transform_indices = @transform_0, window_bounds = array<i64: 2, 8, 16>}, {transform_indices = @transform_1, window_bounds = array<i64: 2, 16>}, {transform_indices = @transform_2, window_bounds = array<i64: 1, 2, 8>}]} {
    %c0_i32 = arith.constant 0 : i32
    %0 = arith.cmpi eq, %arg1, %c0_i32 : i32
    %1 = arith.extui %0 : i1 to i32
    %c0_i32_0 = arith.constant 0 : i32
    %2 = arith.cmpi ne, %1, %c0_i32_0 : i32
    scf.if %2 {
      %cst_19 = arith.constant 0.000000e+00 : f32
      %30 = vector.broadcast %cst_19 : f32 to vector<2x8xf32>
      %c0_20 = arith.constant 0 : index
      %c0_21 = arith.constant 0 : index
      %31 = vector.load %arg5[%c0_20, %c0_21] : memref<2x8xf32, #tpu.memory_space<vmem>>, vector<2x8xf32>
      tpu.vector_store %arg5[%c0_20, %c0_21], %30 {strides = array<i32>} : memref<2x8xf32, #tpu.memory_space<vmem>>, vector<2x8xf32>,
      %cst_22 = arith.constant 0.000000e+00 : f32
      %32 = vector.broadcast %cst_22 : f32 to vector<2x8xf32>
      %c0_23 = arith.constant 0 : index
      %c0_24 = arith.constant 0 : index
      %33 = vector.load %arg6[%c0_23, %c0_24] : memref<2x8xf32, #tpu.memory_space<vmem>>, vector<2x8xf32>
      tpu.vector_store %arg6[%c0_23, %c0_24], %32 {strides = array<i32>} : memref<2x8xf32, #tpu.memory_space<vmem>>, vector<2x8xf32>,
    } else {
    }
    %c0 = arith.constant 0 : index
    %c0_1 = arith.constant 0 : index
    %c0_2 = arith.constant 0 : index
    %3 = vector.load %arg2[%c0, %c0_1, %c0_2] : memref<2x8x16xf32, #tpu.memory_space<vmem>>, vector<2x8x16xf32>
    %c0_3 = arith.constant 0 : index
    %c0_4 = arith.constant 0 : index
    %4 = vector.load %arg3[%c0_3, %c0_4] : memref<2x16xi32, #tpu.memory_space<vmem>>, vector<2x16xi32>
    %c8_i32 = arith.constant 8 : i32
    %5 = arith.muli %arg0, %c8_i32 : i32
    %6 = tpu.iota {dimensions = array<i32: 1>} : vector<1x8x1xi32>
    %7 = vector.broadcast %5 : i32 to vector<1x8x1xi32>
    %8 = arith.addi %7, %6 : vector<1x8x1xi32>
    %9 = vector.shape_cast %4 : vector<2x16xi32> to vector<2x1x16xi32>
    %10 = vector.broadcast %9 : vector<2x1x16xi32> to vector<2x8x16xi32>
    %11 = vector.broadcast %8 : vector<1x8x1xi32> to vector<2x8x16xi32>
    %12 = arith.cmpi eq, %10, %11 : vector<2x8x16xi32>
    %cst = arith.constant 1.000000e+00 : f32
    %cst_5 = arith.constant 0.000000e+00 : f32
    %13 = vector.broadcast %cst : f32 to vector<2x8x16xf32>
    %14 = vector.broadcast %cst_5 : f32 to vector<2x8x16xf32>
    %15 = arith.select %12, %13, %14 : vector<2x8x16xi1>, vector<2x8x16xf32>
    %c0_6 = arith.constant 0 : index
    %c0_7 = arith.constant 0 : index
    %16 = vector.load %arg5[%c0_6, %c0_7] : memref<2x8xf32, #tpu.memory_space<vmem>>, vector<2x8xf32>
    %cst_8 = arith.constant 0.000000e+00 : f32
    %17 = vector.broadcast %cst_8 : f32 to vector<2x8x16xf32>
    %18 = arith.select %12, %3, %17 : vector<2x8x16xi1>, vector<2x8x16xf32>
    %cst_9 = arith.constant dense<0.000000e+00> : vector<2x8xf32>
    %19 = vector.multi_reduction <add>, %18, %cst_9 [2] : vector<2x8x16xf32> to vector<2x8xf32>
    %20 = arith.addf %16, %19 : vector<2x8xf32>
    %c0_10 = arith.constant 0 : index
    %c0_11 = arith.constant 0 : index
    %21 = vector.load %arg5[%c0_10, %c0_11] : memref<2x8xf32, #tpu.memory_space<vmem>>, vector<2x8xf32>
    tpu.vector_store %arg5[%c0_10, %c0_11], %20 {strides = array<i32>} : memref<2x8xf32, #tpu.memory_space<vmem>>, vector<2x8xf32>,
    %c0_12 = arith.constant 0 : index
    %c0_13 = arith.constant 0 : index
    %22 = vector.load %arg6[%c0_12, %c0_13] : memref<2x8xf32, #tpu.memory_space<vmem>>, vector<2x8xf32>
    %23 = arith.addf %3, %15 : vector<2x8x16xf32>
    %cst_14 = arith.constant dense<0.000000e+00> : vector<2x8xf32>
    %24 = vector.multi_reduction <add>, %23, %cst_14 [2] : vector<2x8x16xf32> to vector<2x8xf32>
    %25 = arith.addf %22, %24 : vector<2x8xf32>
    %c0_15 = arith.constant 0 : index
    %c0_16 = arith.constant 0 : index
    %26 = vector.load %arg6[%c0_15, %c0_16] : memref<2x8xf32, #tpu.memory_space<vmem>>, vector<2x8xf32>
    tpu.vector_store %arg6[%c0_15, %c0_16], %25 {strides = array<i32>} : memref<2x8xf32, #tpu.memory_space<vmem>>, vector<2x8xf32>,
    %c0_i32_17 = arith.constant 0 : i32
    %27 = arith.cmpi eq, %arg1, %c0_i32_17 : i32
    %28 = arith.extui %27 : i1 to i32
    %c0_i32_18 = arith.constant 0 : i32
    %29 = arith.cmpi ne, %28, %c0_i32_18 : i32
    scf.if %29 {
      %c0_19 = arith.constant 0 : index
      %c0_20 = arith.constant 0 : index
      %30 = vector.load %arg5[%c0_19, %c0_20] : memref<2x8xf32, #tpu.memory_space<vmem>>, vector<2x8xf32>
      %cst_21 = arith.constant 2.000000e+00 : f32
      %31 = vector.broadcast %cst_21 : f32 to vector<2x8xf32>
      %32 = arith.mulf %31, %30 : vector<2x8xf32>
      %cst_22 = arith.constant 9.99999974E-6 : f32
      %33 = vector.broadcast %cst_22 : f32 to vector<2x8xf32>
      %34 = arith.addf %32, %33 : vector<2x8xf32>
      %c0_23 = arith.constant 0 : index
      %c0_24 = arith.constant 0 : index
      %35 = vector.load %arg6[%c0_23, %c0_24] : memref<2x8xf32, #tpu.memory_space<vmem>>, vector<2x8xf32>
      %cst_25 = arith.constant 9.99999974E-6 : f32
      %36 = vector.broadcast %cst_25 : f32 to vector<2x8xf32>
      %37 = arith.addf %35, %36 : vector<2x8xf32>
      %38 = arith.divf %34, %37 : vector<2x8xf32>
      %39 = vector.shape_cast %38 : vector<2x8xf32> to vector<1x2x8xf32>
      %c0_26 = arith.constant 0 : index
      %c0_27 = arith.constant 0 : index
      %c0_28 = arith.constant 0 : index
      %40 = vector.load %arg4[%c0_26, %c0_27, %c0_28] : memref<1x2x8xf32, #tpu.memory_space<vmem>>, vector<1x2x8xf32>
      tpu.vector_store %arg4[%c0_26, %c0_27, %c0_28], %39 {strides = array<i32>} : memref<1x2x8xf32, #tpu.memory_space<vmem>>, vector<1x2x8xf32>,
    } else {
    }
    return
  }
  func.func @transform_0(%arg0: i32, %arg1: i32) -> (i32, i32, i32) {
    %c0_i32 = arith.constant 0 : i32
    %c0_i32_0 = arith.constant 0 : i32
    return %c0_i32, %arg0, %arg1 : i32, i32, i32
  }
  func.func @transform_1(%arg0: i32, %arg1: i32) -> (i32, i32) {
    %c0_i32 = arith.constant 0 : i32
    %c0_i32_0 = arith.constant 0 : i32
    return %c0_i32, %arg1 : i32, i32
  }
  func.func @transform_2(%arg0: i32, %arg1: i32) -> (i32, i32, i32) {
    %c0_i32 = arith.constant 0 : i32
    %c0_i32_0 = arith.constant 0 : i32
    %c0_i32_1 = arith.constant 0 : i32
    return %arg0, %c0_i32, %c0_i32_0 : i32, i32, i32
  }
}

</mosaic_0001>

<llo_original>
// kernel: tpu_custom_call.1
$region0: #{tpu_custom_call.1}
  #allocation0 [shape = 'u32[]', space=smem, size = 0x4, offset = 0x4, fixed_abs, tag = 'smem constant byte address 0x4 - core index']
  #allocation1 [shape = 'u32[144,128]{1,0:T(1,128)}', space=vmem, size = 0x12000, scoped, tag = 'internal scratch']
  #allocation2 [shape = 'f32[2,8]{1,0:T(2,128)}', space=vmem, size = 0x400, scoped, tag = 'scratch operand']
  #allocation3 [shape = 'f32[2,8]{1,0:T(2,128)}', space=vmem, size = 0x400, scoped, tag = 'scratch operand']
  %s0 = inlined_call_operand.hbm [shape: f32[2,16,16], index: 0, kind: input, shape index: {}]
  %s1 = inlined_call_operand.hbm [shape: s32[2,16], index: 1, kind: input, shape index: {}]
  %s2 = inlined_call_operand.hbm [shape: f32[2,2,8], index: 2, kind: output, shape index: {}]
  %s3 = sld [smem:[#allocation0]]
  $region57: #{tpu_custom_call.1} parent=0
    _
  %s5 = ssub.s32 1, %s3
  %s6 = scalar_select 0, %s5, %s3
  $region1: #{tpu_custom_call.1} parent=0
    #allocation4 [shape = 'u8[16384]{0}', space=vmem, size = 0x4000, scoped, tag = 'input window, operand 0']
    #allocation5 [shape = 's32[2]{0}', space=sflag, size = 0x8, scoped, tag = 'scoped memory for tpu_custom_call.1']
    #allocation6 [shape = 's32[2]{0}', space=sflag, size = 0x8, scoped, tag = 'scoped memory for tpu_custom_call.1']
    #allocation7 [shape = 'u8[1024]{0}', space=vmem, size = 0x400, scoped, tag = 'input window, operand 1, single buffered']
    #allocation8 [shape = 's32[1]{0}', space=sflag, size = 0x4, scoped, tag = 'scoped memory for tpu_custom_call.1']
    #allocation9 [shape = 'u8[2048]{0}', space=vmem, size = 0x800, scoped, tag = 'output window, operand 0']
    %7 = vsyncpa [#allocation5], 0
    %s8 = scalar_lea.sflag [#allocation5], 1
    %9 = vsyncpa %s8, 0
    %10 = vsyncpa [#allocation8], 0
    %11 = vsyncpa [#allocation6], 0
    %s12 = scalar_lea.sflag [#allocation6], 1
    %13 = vsyncpa %s12, 0
    loop: start=0, step=1, limit=4
    $region2: #{tpu_custom_call.1} parent=1 // loop_pre_header
      _
    $region3: #{tpu_custom_call.1} parent=1 // loop_header
      %s15 = sphi 0, %s19
      %p16 = scmp.ge.s32.totalorder %s15, 4
      %s22 = sphi 0, %s34
      %s23 = sphi 0, %s30
      %s24 = sphi 0, %s22
      %s25 = sphi 0, %s23
      %s26 = sphi 0, %s24
      %s27 = sphi 0, %s25
      %s39 = sphi 0, %s41
      %s42 = sphi 0, %s39
      %s43 = sphi 0, %s42
      %s59 = sphi 0, %s43
      %s65 = sphi 0, %s67
      %s68 = sphi 0, %s65
      %s69 = sphi 0, %s68
      %s85 = sphi 0, %s69
      %s91 = sphi 0, %s93
      %s94 = sphi 0, %s91
      %s95 = sphi 0, %s94
      %s111 = sphi 0, %s95
    $region4: #{tpu_custom_call.1} parent=1 // loop_header_branch
      %18 = sbr.rel (%p16) target = $region8
    $region5: #{tpu_custom_call.1} parent=1 // loop_body
      %s20 = ssub.s32 %s15, 1
      %s21 = ssub.s32 %s15, 2
      %s28 = sadd.s32 1, %s23
      %p29 = scmp.ge.s32.totalorder %s28, 1
      %s30 = scalar_select %p29, 0, %s28
      %s31 = sadd.s32 1, %s22
      %s32 = scalar_select %p29, %s31, %s22
      %p33 = scmp.ge.s32.totalorder %s32, 2
      %s34 = scalar_select %p33, 0, %s32
      %s35 = ssub.s32 %s22, %s34
      %s36 = ssub.s32 %s23, %s30
      %s37 = sor.u32 %s35, %s36
      %p38 = scmp.eq.s32.totalorder %s37, 0
      %s40 = sadd.s32 %s39, 1
      %s41 = scalar_select %p38, %s39, %s40
      %p44 = pneg %p38
      %p45 = scmp.eq.s32.totalorder %s15, 1
      %p46 = por %p44, %p45
      %p47 = scmp.ne.s32.totalorder %s39, %s42
      %p48 = scmp.eq.s32.totalorder %s15, 0
      %p49 = por %p47, %p48
      %p50 = scmp.ne.s32.totalorder %s39, %s42
      %p51 = scmp.eq.s32.totalorder %s20, 1
      %p52 = por %p50, %p51
      %p53 = scmp.ne.s32.totalorder %s42, %s43
      %p54 = scmp.eq.s32.totalorder %s20, 0
      %p55 = por %p53, %p54
      %p56 = scmp.ne.s32.totalorder %s42, %s43
      %p57 = scmp.eq.s32.totalorder %s21, 1
      %p58 = por %p56, %p57
      %p60 = scmp.ne.s32.totalorder %s43, %s59
      %p61 = scmp.eq.s32.totalorder %s21, 0
      %p62 = por %p60, %p61
      %s63 = ssub.s32 %s23, %s30
      %p64 = scmp.eq.s32.totalorder %s63, 0
      %s66 = sadd.s32 %s65, 1
      %s67 = scalar_select %p64, %s65, %s66
      %p70 = pneg %p64
      %p71 = scmp.eq.s32.totalorder %s15, 1
      %p72 = por %p70, %p71
      %p73 = scmp.ne.s32.totalorder %s65, %s68
      %p74 = scmp.eq.s32.totalorder %s15, 0
      %p75 = por %p73, %p74
      %p76 = scmp.ne.s32.totalorder %s65, %s68
      %p77 = scmp.eq.s32.totalorder %s20, 1
      %p78 = por %p76, %p77
      %p79 = scmp.ne.s32.totalorder %s68, %s69
      %p80 = scmp.eq.s32.totalorder %s20, 0
      %p81 = por %p79, %p80
      %p82 = scmp.ne.s32.totalorder %s68, %s69
      %p83 = scmp.eq.s32.totalorder %s21, 1
      %p84 = por %p82, %p83
      %p86 = scmp.ne.s32.totalorder %s69, %s85
      %p87 = scmp.eq.s32.totalorder %s21, 0
      %p88 = por %p86, %p87
      %s89 = ssub.s32 %s22, %s34
      %p90 = scmp.eq.s32.totalorder %s89, 0
      %s92 = sadd.s32 %s91, 1
      %s93 = scalar_select %p90, %s91, %s92
      %p96 = pneg %p90
      %p97 = scmp.eq.s32.totalorder %s15, 1
      %p98 = por %p96, %p97
      %p99 = scmp.ne.s32.totalorder %s91, %s94
      %p100 = scmp.eq.s32.totalorder %s15, 0
      %p101 = por %p99, %p100
      %p102 = scmp.ne.s32.totalorder %s91, %s94
      %p103 = scmp.eq.s32.totalorder %s20, 1
      %p104 = por %p102, %p103
      %p105 = scmp.ne.s32.totalorder %s94, %s95
      %p106 = scmp.eq.s32.totalorder %s20, 0
      %p107 = por %p105, %p106
      %p108 = scmp.ne.s32.totalorder %s94, %s95
      %p109 = scmp.eq.s32.totalorder %s21, 1
      %p110 = por %p108, %p109
      %p112 = scmp.ne.s32.totalorder %s95, %s111
      %p113 = scmp.eq.s32.totalorder %s21, 0
      %p114 = por %p112, %p113
      %p115 = scmp.le.s32.totalorder 1, %s15
      %p116 = scmp.lt.s32.totalorder %s15, 3
      %p117 = pnand %p115, %p116
      %p118 = pneg %p117
      // Predicated region
      $region9: #{tpu_custom_call.1} parent=5 // pred_check
        _
      $region10: #{tpu_custom_call.1} parent=5 // pred_check_branch
        %120 = sbr.rel (%p117) target = $region12
      $region11: #{tpu_custom_call.1} parent=5 // pred_region
        %s121 = ssub.s32 %s15, 1
        // Predicated region
        $region13: #{tpu_custom_call.1} parent=11 // pred_check
          %p122 = pneg %p81
        $region14: #{tpu_custom_call.1} parent=11 // pred_check_branch
          %124 = sbr.rel (%p122) target = $region16
        $region15: #{tpu_custom_call.1} parent=11 // pred_region
          %s126 = ssub.s32 32, 32
          %127 = vsyncadd [#allocation8], %s126
          %s128 = smul.addr %s25, 32
          %s129 = scalar_lea.hbm %s1, %s128
          %s131 = sshll.u32 [#allocation7], 4
          %s132 = int_to_ptr.vmem [resolvable:$true] %s131
          %134 = dma.hbm_to_vmem [thread:$0]  %s129, 32, %s132, [#allocation8]
        $region16: #{tpu_custom_call.1} parent=11 // pred_fallthru
          _
      $region12: #{tpu_custom_call.1} parent=5 // pred_fallthru
        _
      %p135 = scmp.lt.s32.totalorder %s15, 2
      // Predicated region
      $region17: #{tpu_custom_call.1} parent=5 // pred_check
        %p136 = pneg %p135
      $region18: #{tpu_custom_call.1} parent=5 // pred_check_branch
        %138 = sbr.rel (%p136) target = $region20
      $region19: #{tpu_custom_call.1} parent=5 // pred_region
        // Predicated region
        $region21: #{tpu_custom_call.1} parent=19 // pred_check
          %p139 = pneg %p49
        $region22: #{tpu_custom_call.1} parent=19 // pred_check_branch
          %141 = sbr.rel (%p139) target = $region24
        $region23: #{tpu_custom_call.1} parent=19 // pred_region
          %s142 = sand.u32 %s39, 1
          %s143 = scalar_lea.sflag [#allocation5], %s142
          %s144 = sand.u32 %s39, 1
          %s145 = smul.addr %s144, 16
          %s146 = scalar_lea.vmem [#allocation4], %s145
          %s148 = ssub.s32 256, 256
          %149 = vsyncadd %s143, %s148
          %s150 = sadd.s32 %s23, %s22
          %s151 = smul.addr %s150, 128
          %s152 = scalar_lea.hbm %s0, %s151
          %s153 = sshll.u32 %s146, 4
          %s154 = int_to_ptr.vmem [resolvable:$true] %s153
          %159 = dma.hbm_to_vmem [thread:$0]  %s152, 256, %s154, %s143, 256, 128, 8
        $region24: #{tpu_custom_call.1} parent=19 // pred_fallthru
          _
      $region20: #{tpu_custom_call.1} parent=5 // pred_fallthru
        _
      %p160 = scmp.le.s32.totalorder 1, %s15
      %p161 = scmp.lt.s32.totalorder %s15, 3
      %p162 = pnand %p160, %p161
      %p163 = pneg %p162
      // Predicated region
      $region25: #{tpu_custom_call.1} parent=5 // pred_check
        _
      $region26: #{tpu_custom_call.1} parent=5 // pred_check_branch
        %165 = sbr.rel (%p162) target = $region28
      $region27: #{tpu_custom_call.1} parent=5 // pred_region
        %s166 = ssub.s32 %s15, 1
        %s167 = sand.u32 %s42, 1
        %s168 = scalar_lea.sflag [#allocation5], %s167
        %s169 = sand.u32 %s42, 1
        %s170 = smul.addr %s169, 16
        %s171 = scalar_lea.vmem [#allocation4], %s170
        // Predicated region
        $region29: #{tpu_custom_call.1} parent=27 // pred_check
          %p172 = pneg %p55
        $region30: #{tpu_custom_call.1} parent=27 // pred_check_branch
          %174 = sbr.rel (%p172) target = $region32
        $region31: #{tpu_custom_call.1} parent=27 // pred_region
          %175 = dma.done %s168, 256
        $region32: #{tpu_custom_call.1} parent=27 // pred_fallthru
          _
        // Predicated region
        $region33: #{tpu_custom_call.1} parent=27 // pred_check
          %p176 = pneg %p81
        $region34: #{tpu_custom_call.1} parent=27 // pred_check_branch
          %178 = sbr.rel (%p176) target = $region36
        $region35: #{tpu_custom_call.1} parent=27 // pred_region
          %179 = dma.done [#allocation8], 32
        $region36: #{tpu_custom_call.1} parent=27 // pred_fallthru
          _
        %s180 = sand.u32 %s42, 1
        %s181 = scalar_lea.sflag [#allocation5], %s180
        %s182 = sand.u32 %s42, 1
        %s183 = smul.addr %s182, 16
        %s184 = scalar_lea.vmem [#allocation4], %s183
        %p185 = pneg %p55
        %p186 = pneg %p52
        %p187 = pneg %p81
        %p188 = pneg %p78
        %p189 = pneg %p107
        %p190 = pneg %p104
        %s191 = sand.u32 %s94, 1
        %s192 = scalar_lea.sflag [#allocation6], %s191
        %s193 = sand.u32 %s94, 1
        %s194 = smul.addr %s193, 2
        %s195 = scalar_lea.vmem [#allocation9], %s194
        %p196 = scmp.eq.s32.totalorder %s25, 0
        // Predicated region
        $region37: #{tpu_custom_call.1} parent=27 // pred_check
          %p197 = pneg %p196
        $region38: #{tpu_custom_call.1} parent=27 // pred_check_branch
          %199 = sbr.rel (%p197) target = $region40
        $region39: #{tpu_custom_call.1} parent=27 // pred_region
          %vm200 = vcmask 58368
          %201 = vst.msk [vmem:[#allocation2] sm:$0x3] %vm200, 0.0
          %202 = vst.msk [vmem:[#allocation3] sm:$0x3] %vm200, 0.0
        $region40: #{tpu_custom_call.1} parent=27 // pred_fallthru
          _
        %v203 = vld [vmem:[%s171] sm:$0xff]
        %v204 = vld [vmem:[%s171 + $0x8] sm:$0xff]
        %v205 = vld [vmem:[#allocation7] sm:$0x3]
        %s206 = smul.u32 %s24, 8
        %v207 = vlaneseq
        %v208 = vshrl.u32 %v207, 7
        %v209 = vstv %s206
        %v210 = vadd.s32 %v209, %v208
        %v212 = vunpack.c.l.s4 1966171168
        %v213 = vunpack.c.0.s8 %v212
        %v214 = vlaneseq
        %v215 = vshrl.u32 %v214, 7
        %v216 = vsub.s32 %v213, %v215
        %v217 = vrot.slane %v205, %v216
        %v218 = vcombine.high %v217, %v217
        %v220 = vunpack.c.l.s4 1966171168
        %v221 = vunpack.c.0.s8 %v220
        %v222 = vlaneseq
        %v223 = vshrl.u32 %v222, 7
        %v224 = vsub.s32 %v221, %v223
        %v225 = vrot.slane %v217, %v224
        %v227 = vunpack.c.l.s4 1966171168
        %v228 = vunpack.c.0.s8 %v227
        %v229 = vlaneseq
        %v230 = vshrl.u32 %v229, 7
        %v231 = vsub.s32 %v228, %v230
        %v232 = vrot.slane %v218, %v231
        %v233 = vlaneseq
        %v234 = vshrl.u32 %v233, 7
        %v235 = vsub.s32 0, %v234
        %v236 = vrot.slane %v225, %v235
        %v237 = vlaneseq
        %v238 = vshrl.u32 %v237, 7
        %v239 = vsub.s32 0, %v238
        %v240 = vrot.slane %v232, %v239
        %vm241 = vcmp.eq.s32.totalorder %v236, %v210
        %vm242 = vcmp.eq.s32.totalorder %v240, %v210
        %v243 = vsel %vm241, 1.0, 0.0
        %v244 = vsel %vm242, 1.0, 0.0
        %v245 = vld [vmem:[#allocation2] sm:$0x3]
        %v246 = vsel %vm241, %v203, 0.0
        %v247 = vsel %vm242, %v204, 0.0
        %vm248 = vcmask 130048
        %v249 = vsel %vm248, %v246, 0.0
        %250 = vadd.xlane.f32.xlu0 %v249
        %v251 = vpop.xlane.xlu0 %250
        %v252 = vsel %vm248, %v247, 0.0
        %253 = vadd.xlane.f32.xlu0 %v252
        %v254 = vpop.xlane.xlu0 %253
        %v257 = vlaneseq
        %v258 = vand.u32 %v257, 127
        %v259 = vlaneseq
        %v260 = vshrl.u32 %v259, 7
        %v261 = vsub.s32 %v258, %v260
        %v262 = vrot.slane %v251, %v261
        %v263 = vlaneseq
        %v264 = vshrl.u32 %v263, 7
        %v265 = vsub.s32 %v258, %v264
        %v266 = vrot.slane %v254, %v265
        %vm267 = vcmask 1041409
        %v268 = vsel %vm267, %v266, %v262
        %v270 = vadd.f32 %v245, %v268
        %vm271 = vcmask 58368
        %272 = vst.msk [vmem:[#allocation2] sm:$0x3] %vm271, %v270
        %v273 = vld [vmem:[#allocation3] sm:$0x3]
        %v274 = vadd.f32 %v203, %v243
        %v275 = vadd.f32 %v204, %v244
        %v276 = vsel %vm248, %v274, 0.0
        %277 = vadd.xlane.f32.xlu0 %v276
        %v278 = vpop.xlane.xlu0 %277
        %v279 = vsel %vm248, %v275, 0.0
        %280 = vadd.xlane.f32.xlu0 %v279
        %v281 = vpop.xlane.xlu0 %280
        %v284 = vlaneseq
        %v285 = vshrl.u32 %v284, 7
        %v286 = vsub.s32 %v258, %v285
        %v287 = vrot.slane %v278, %v286
        %v288 = vlaneseq
        %v289 = vshrl.u32 %v288, 7
        %v290 = vsub.s32 %v258, %v289
        %v291 = vrot.slane %v281, %v290
        %v292 = vsel %vm267, %v291, %v287
        %v294 = vadd.f32 %v273, %v292
        %295 = vst.msk [vmem:[#allocation3] sm:$0x3] %vm271, %v294
        // Predicated region
        $region41: #{tpu_custom_call.1} parent=27 // pred_check
          %p296 = pneg %p196
        $region42: #{tpu_custom_call.1} parent=27 // pred_check_branch
          %298 = sbr.rel (%p296) target = $region44
        $region43: #{tpu_custom_call.1} parent=27 // pred_region
          %v299 = vld [vmem:[#allocation2] sm:$0x3]
          %v300 = vmul.f32 %v299, 2.0
          %v301 = vadd.f32 %v300, 1e-05
          %v302 = vld [vmem:[#allocation3] sm:$0x3]
          %v303 = vadd.f32 %v302, 1e-05
          %v304 = vrcp.pop %v303
          %v305 = vmul.f32 %v301, %v304
          %306 = vst.msk [vmem:[%s195] sm:$0x3] %vm271, %v305
        $region44: #{tpu_custom_call.1} parent=27 // pred_fallthru
          _
        %s307 = sand.u32 %s94, 1
        %s308 = scalar_lea.sflag [#allocation6], %s307
        %s309 = sand.u32 %s94, 1
        %s310 = smul.addr %s309, 2
        %s311 = scalar_lea.vmem [#allocation9], %s310
        // Predicated region
        $region45: #{tpu_custom_call.1} parent=27 // pred_check
          %p312 = pneg %p104
        $region46: #{tpu_custom_call.1} parent=27 // pred_check_branch
          %314 = sbr.rel (%p312) target = $region48
        $region47: #{tpu_custom_call.1} parent=27 // pred_region
          %s316 = ssub.s32 32, 32
          %317 = vsyncadd %s308, %s316
          %s318 = smul.addr %s24, 32
          %s319 = scalar_lea.hbm %s2, %s318
          %s321 = sshll.u32 %s311, 4
          %s322 = int_to_ptr.vmem [resolvable:$true] %s321
          %324 = dma.vmem_to_hbm [thread:$0]  %s322, 32, %s319, %s308
        $region48: #{tpu_custom_call.1} parent=27 // pred_fallthru
          _
      $region28: #{tpu_custom_call.1} parent=5 // pred_fallthru
        _
      %p325 = scmp.le.s32.totalorder 2, %s15
      // Predicated region
      $region49: #{tpu_custom_call.1} parent=5 // pred_check
        %p326 = pneg %p325
      $region50: #{tpu_custom_call.1} parent=5 // pred_check_branch
        %328 = sbr.rel (%p326) target = $region52
      $region51: #{tpu_custom_call.1} parent=5 // pred_region
        %s329 = ssub.s32 %s15, 2
        // Predicated region
        $region53: #{tpu_custom_call.1} parent=51 // pred_check
          %p330 = pneg %p110
        $region54: #{tpu_custom_call.1} parent=51 // pred_check_branch
          %332 = sbr.rel (%p330) target = $region56
        $region55: #{tpu_custom_call.1} parent=51 // pred_region
          %s333 = sand.u32 %s95, 1
          %s334 = scalar_lea.sflag [#allocation6], %s333
          %s335 = sand.u32 %s95, 1
          %s336 = smul.addr %s335, 2
          %s337 = scalar_lea.vmem [#allocation9], %s336
          %338 = dma.done %s334, 32
        $region56: #{tpu_custom_call.1} parent=51 // pred_fallthru
          _
      $region52: #{tpu_custom_call.1} parent=5 // pred_fallthru
        _
    $region6: #{tpu_custom_call.1} parent=1 // loop_footer
      %s19 = sadd.s32 1, %s15
    $region7: #{tpu_custom_call.1} parent=1 // loop_footer_branch
      %14 = sbr.rel target = $region3
    $region8: #{tpu_custom_call.1} parent=1 // loop_exit
      _
    %339 = vsyncpa [#allocation5], 1
    %s340 = scalar_lea.sflag [#allocation5], 1
    %341 = vsyncpa %s340, 1
    %342 = vsyncpa [#allocation8], 1
    %343 = vsyncpa [#allocation6], 1
    %s344 = scalar_lea.sflag [#allocation6], 1
    %345 = vsyncpa %s344, 1

</llo_original>
